<compile_context>
chip_gen: v7x
topology: tpu7x:2x2x1
jax: 0.10.0
libtpu: 0.0.40
codegen_flags: <defaults>
</compile_context>

<pallas_src>
import functools

import jax
import jax.numpy as jnp
from jax.experimental import pallas as pl
from jax.experimental.pallas import tpu as pltpu


def _round_up(x: int, m: int) -> int:
    return ((x + m - 1) // m) * m


# ---------------------------------------------------------------------------
# Fused kernel: (in-VMEM QKV projection) + flash attention w/ online softmax
# ---------------------------------------------------------------------------
def _fused_attn_kernel(x_q_ref, x_kv_ref, w_q_ref, b_q_ref, w_kv_ref, b_kv_ref,
                       o_ref, q_sc, m_sc, l_sc, acc_sc,
                       *, seq_len: int, kv_tile: int, needs_mask: bool):
    # x_q_ref : (1, Tq, E) query-row tile of x     (resident across kv steps)
    # x_kv_ref: (1, Tk, E) kv-row tile of x
    # w_q_ref : (E, D);  b_q_ref : (1, D)          (resident)
    # w_kv_ref: (E, 2D); b_kv_ref: (1, 2D)         (resident, fused K|V)
    # o_ref   : (1, Tq, D)
    # q_sc    : (Tq, D) f32 scaled-Q scratch; m/l: (Tq, 1); acc: (Tq, D)
    d = o_ref.shape[-1]
    kv_i = pl.program_id(2)

    @pl.when(kv_i == 0)
    def _():
        # Project the Q row-tile once per (batch, q-tile); fold in 1/sqrt(D).
        xq = x_q_ref[0]
        q = jnp.dot(xq, w_q_ref[...], preferred_element_type=jnp.float32)
        q = (q + b_q_ref[...].astype(jnp.float32)) * (1.0 / float(d) ** 0.5)
        q_sc[...] = q
        m_sc[...] = jnp.full_like(m_sc, -jnp.inf)
        l_sc[...] = jnp.zeros_like(l_sc)
        acc_sc[...] = jnp.zeros_like(acc_sc)

    # Project K and V for this kv tile with one fused (Tk, E) @ (E, 2D) matmul.
    xk = x_kv_ref[0]
    kv = jnp.dot(xk, w_kv_ref[...], preferred_element_type=jnp.float32)
    kv = kv + b_kv_ref[...].astype(jnp.float32)
    k = kv[:, :d]
    v = kv[:, d:]

    # Scores: contract the feature dims directly (no explicit K transpose).
    s = jax.lax.dot_general(q_sc[...], k, (((1,), (1,)), ((), ())),
                            preferred_element_type=jnp.float32)

    if needs_mask:
        # Mask padded kv columns.  Every kv tile is guaranteed to contain at
        # least one real column (padding < kv_tile), so no row is all -inf.
        col = jax.lax.broadcasted_iota(jnp.int32, s.shape, 1) + kv_i * kv_tile
        s = jnp.where(col < seq_len, s, -jnp.inf)

    m_prev = m_sc[...]
    m_new = jnp.maximum(m_prev, jnp.max(s, axis=-1, keepdims=True))
    alpha = jnp.exp(m_prev - m_new)
    p = jnp.exp(s - m_new)
    l_sc[...] = alpha * l_sc[...] + jnp.sum(p, axis=-1, keepdims=True)
    acc_sc[...] = alpha * acc_sc[...] + jnp.dot(
        p, v, preferred_element_type=jnp.float32)
    m_sc[...] = m_new

    @pl.when(kv_i == pl.num_programs(2) - 1)
    def _():
        # Exact normalization (runs once per (batch, q-tile); negligible cost).
        o_ref[0] = (acc_sc[...] / l_sc[...]).astype(o_ref.dtype)


# ---------------------------------------------------------------------------
# Wrappers
# ---------------------------------------------------------------------------
def prepare_params(wq, wk, wv, bq, bk, bv):
    """Fuse the K/V projection params ONCE at init (not per forward call)."""
    w_kv = jnp.concatenate([wk, wv], axis=1)          # (E, 2D)
    b_kv = jnp.concatenate([bk, bv]).reshape(1, -1)   # (1, 2D)
    return wq, bq.reshape(1, -1), w_kv, b_kv


def self_attention(x, w_q, b_q, w_kv, b_kv, *, tile_cap: int = 256):
    """x: [B, S, E]; w_q: [E, D]; b_q: [1, D]; w_kv: [E, 2D]; b_kv: [1, 2D].

    Returns Z: [B, S, D] (matches SelfAttention.forward).
    """
    b, s, e = x.shape
    d = w_q.shape[1]

    # One tile size for both q and kv rows; pad S up to a tile multiple and
    # mask the tail instead of falling back to a full-extent (S x S) score
    # block.  Keeps VMEM bounded independent of S (v7x-safe).
    t = min(tile_cap, _round_up(s, 8))
    s_pad = _round_up(s, t)
    needs_mask = s_pad != s
    if needs_mask:
        x = jnp.pad(x, ((0, 0), (0, s_pad - s), (0, 0)))

    kernel = functools.partial(_fused_attn_kernel, seq_len=s, kv_tile=t,
                               needs_mask=needs_mask)

    x_q_spec = pl.BlockSpec((1, t, e), lambda bi, qi, ki: (bi, qi, 0))
    x_kv_spec = pl.BlockSpec((1, t, e), lambda bi, qi, ki: (bi, ki, 0))
    w_q_spec = pl.BlockSpec((e, d), lambda bi, qi, ki: (0, 0))
    b_q_spec = pl.BlockSpec((1, d), lambda bi, qi, ki: (0, 0))
    w_kv_spec = pl.BlockSpec((e, 2 * d), lambda bi, qi, ki: (0, 0))
    b_kv_spec = pl.BlockSpec((1, 2 * d), lambda bi, qi, ki: (0, 0))
    o_spec = pl.BlockSpec((1, t, d), lambda bi, qi, ki: (bi, qi, 0))

    out = pl.pallas_call(
        kernel,
        out_shape=jax.ShapeDtypeStruct((b, s_pad, d), x.dtype),
        grid_spec=pltpu.PrefetchScalarGridSpec(
            num_scalar_prefetch=0,
            grid=(b, s_pad // t, s_pad // t),
            in_specs=[x_q_spec, x_kv_spec, w_q_spec, b_q_spec,
                      w_kv_spec, b_kv_spec],
            out_specs=o_spec,
            scratch_shapes=[
                pltpu.VMEM((t, d), jnp.float32),   # scaled Q tile (resident)
                pltpu.VMEM((t, 1), jnp.float32),   # running max
                pltpu.VMEM((t, 1), jnp.float32),   # running denominator
                pltpu.VMEM((t, d), jnp.float32),   # f32 output accumulator
            ],
        ),
        compiler_params=pltpu.CompilerParams(
            dimension_semantics=("parallel", "parallel", "arbitrary")),
    )(x, x, w_q, b_q, w_kv, b_kv)

    if needs_mask:
        out = out[:, :s, :]
    return out


def _reference(x, wq, wk, wv, bq, bk, bv):
    q = x @ wq + bq
    k = x @ wk + bk
    v = x @ wv + bv
    d = q.shape[-1]
    score = jnp.einsum("bsd,btd->bst", q, k) / (d ** 0.5)
    attn = jax.nn.softmax(score, axis=-1)
    return jnp.einsum("bst,btd->bsd", attn, v)


def _run_case(key, B, S, E, D, tile_cap):
    kx, kq, kk, kv_, kbq, kbk, kbv = jax.random.split(key, 7)
    x = jax.random.normal(kx, (B, S, E), dtype=jnp.float32)
    # "Linear" params stored as [E, D] (transpose of torch's [D, E]).
    wq = jax.random.normal(kq, (E, D), dtype=jnp.float32) * 0.1
    wk = jax.random.normal(kk, (E, D), dtype=jnp.float32) * 0.1
    wv = jax.random.normal(kv_, (E, D), dtype=jnp.float32) * 0.1
    bq = jax.random.normal(kbq, (D,), dtype=jnp.float32) * 0.1
    bk = jax.random.normal(kbk, (D,), dtype=jnp.float32) * 0.1
    bv = jax.random.normal(kbv, (D,), dtype=jnp.float32) * 0.1

    w_q, b_q, w_kv, b_kv = prepare_params(wq, wk, wv, bq, bk, bv)
    z = self_attention(x, w_q, b_q, w_kv, b_kv, tile_cap=tile_cap)
    jax.block_until_ready(z)

    z_ref = _reference(x, wq, wk, wv, bq, bk, bv)
    assert z.shape == (B, S, D)
    err = float(jnp.max(jnp.abs(z - z_ref)))
    # Tolerance covers potential MXU bf16-pass differences on hardware;
    # interpret-mode / exact-f32 error is ~1e-6.
    assert jnp.allclose(z, z_ref, atol=2e-2, rtol=2e-2), (
        f"mismatch vs reference (max abs err {err})")


if __name__ == "__main__":
    key = jax.random.PRNGKey(0)
    k1, k2 = jax.random.split(key, 2)
    # Primary small shape: batch=2, seq=8, embedding_dim=32, head_dim=16.
    _run_case(k1, B=2, S=8, E=32, D=16, tile_cap=256)
    # Exercise padding/masking + multi-kv-tile online-softmax accumulation.
    _run_case(k2, B=2, S=100, E=32, D=16, tile_cap=32)
    print("KERNEL_OK")
</pallas_src>

<mosaic_0001>
module attributes {stable_mosaic.version = 11 : i64} {
  func.func @_fused_attn_kernel(%arg0: i32, %arg1: i32, %arg2: i32, %arg3: memref<1x8x32xf32, #tpu.memory_space<vmem>>, %arg4: memref<1x8x32xf32, #tpu.memory_space<vmem>>, %arg5: memref<32x16xf32, #tpu.memory_space<vmem>>, %arg6: memref<1x16xf32, #tpu.memory_space<vmem>>, %arg7: memref<32x32xf32, #tpu.memory_space<vmem>>, %arg8: memref<1x32xf32, #tpu.memory_space<vmem>>, %arg9: memref<1x8x16xf32, #tpu.memory_space<vmem>>, %arg10: memref<8x16xf32, #tpu.memory_space<vmem>>, %arg11: memref<8x1xf32, #tpu.memory_space<vmem>>, %arg12: memref<8x1xf32, #tpu.memory_space<vmem>>, %arg13: memref<8x16xf32, #tpu.memory_space<vmem>>) attributes {dimension_semantics = [#tpu.dimension_semantics<parallel>, #tpu.dimension_semantics<parallel>, #tpu.dimension_semantics<arbitrary>], iteration_bounds = array<i64: 2, 1, 1>, scalar_prefetch = 0 : i64, scratch_operands = 4 : i64, tpu.core_type = #tpu.core_type<tc>, window_params = [{transform_indices = @transform_0, window_bounds = array<i64: 1, 8, 32>}, {transform_indices = @transform_1, window_bounds = array<i64: 1, 8, 32>}, {pipeline_mode = #tpu.pipeline_mode<synchronous>, transform_indices = @transform_2, window_bounds = array<i64: 32, 16>}, {pipeline_mode = #tpu.pipeline_mode<synchronous>, transform_indices = @transform_3, window_bounds = array<i64: 1, 16>}, {pipeline_mode = #tpu.pipeline_mode<synchronous>, transform_indices = @transform_4, window_bounds = array<i64: 32, 32>}, {pipeline_mode = #tpu.pipeline_mode<synchronous>, transform_indices = @transform_5, window_bounds = array<i64: 1, 32>}, {transform_indices = @transform_6, window_bounds = array<i64: 1, 8, 16>}]} {
    %c0_i32 = arith.constant 0 : i32
    %0 = arith.cmpi eq, %arg2, %c0_i32 : i32
    %1 = arith.extui %0 : i1 to i32
    %c0_i32_0 = arith.constant 0 : i32
    %2 = arith.cmpi ne, %1, %c0_i32_0 : i32
    scf.if %2 {
      %c0_27 = arith.constant 0 : index
      %c0_28 = arith.constant 0 : index
      %c0_29 = arith.constant 0 : index
      %39 = vector.load %arg3[%c0_27, %c0_28, %c0_29] : memref<1x8x32xf32, #tpu.memory_space<vmem>>, vector<1x8x32xf32>
      %40 = vector.shape_cast %39 : vector<1x8x32xf32> to vector<8x32xf32>
      %c0_30 = arith.constant 0 : index
      %c0_31 = arith.constant 0 : index
      %41 = vector.load %arg5[%c0_30, %c0_31] : memref<32x16xf32, #tpu.memory_space<vmem>>, vector<32x16xf32>
      %cst_32 = arith.constant dense<0.000000e+00> : vector<8x16xf32>
      %42 = tpu.matmul %40, %41, %cst_32 {dimension_numbers = #tpu.dot_dimension_numbers<[1], [0], [0], [1], [0, 0, 1, 1], [], []>} : vector<8x32xf32>, vector<32x16xf32>, vector<8x16xf32> -> vector<8x16xf32>
      %c0_33 = arith.constant 0 : index
      %c0_34 = arith.constant 0 : index
      %43 = vector.load %arg6[%c0_33, %c0_34] : memref<1x16xf32, #tpu.memory_space<vmem>>, vector<1x16xf32>
      %44 = vector.broadcast %43 : vector<1x16xf32> to vector<8x16xf32>
      %45 = arith.addf %42, %44 : vector<8x16xf32>
      %cst_35 = arith.constant 2.500000e-01 : f32
      %46 = vector.broadcast %cst_35 : f32 to vector<8x16xf32>
      %47 = arith.mulf %45, %46 : vector<8x16xf32>
      %c0_36 = arith.constant 0 : index
      %c0_37 = arith.constant 0 : index
      %48 = vector.load %arg10[%c0_36, %c0_37] : memref<8x16xf32, #tpu.memory_space<vmem>>, vector<8x16xf32>
      tpu.vector_store %arg10[%c0_36, %c0_37], %47 {strides = array<i32>} : memref<8x16xf32, #tpu.memory_space<vmem>>, vector<8x16xf32>,
      %cst_38 = arith.constant 0xFF800000 : f32
      %49 = vector.broadcast %cst_38 : f32 to vector<8x1xf32>
      %c0_39 = arith.constant 0 : index
      %c0_40 = arith.constant 0 : index
      %50 = vector.load %arg11[%c0_39, %c0_40] : memref<8x1xf32, #tpu.memory_space<vmem>>, vector<8x1xf32>
      tpu.vector_store %arg11[%c0_39, %c0_40], %49 {strides = array<i32>} : memref<8x1xf32, #tpu.memory_space<vmem>>, vector<8x1xf32>,
      %cst_41 = arith.constant 0.000000e+00 : f32
      %51 = vector.broadcast %cst_41 : f32 to vector<8x1xf32>
      %c0_42 = arith.constant 0 : index
      %c0_43 = arith.constant 0 : index
      %52 = vector.load %arg12[%c0_42, %c0_43] : memref<8x1xf32, #tpu.memory_space<vmem>>, vector<8x1xf32>
      tpu.vector_store %arg12[%c0_42, %c0_43], %51 {strides = array<i32>} : memref<8x1xf32, #tpu.memory_space<vmem>>, vector<8x1xf32>,
      %cst_44 = arith.constant 0.000000e+00 : f32
      %53 = vector.broadcast %cst_44 : f32 to vector<8x16xf32>
      %c0_45 = arith.constant 0 : index
      %c0_46 = arith.constant 0 : index
      %54 = vector.load %arg13[%c0_45, %c0_46] : memref<8x16xf32, #tpu.memory_space<vmem>>, vector<8x16xf32>
      tpu.vector_store %arg13[%c0_45, %c0_46], %53 {strides = array<i32>} : memref<8x16xf32, #tpu.memory_space<vmem>>, vector<8x16xf32>,
    } else {
    }
    %c0 = arith.constant 0 : index
    %c0_1 = arith.constant 0 : index
    %c0_2 = arith.constant 0 : index
    %3 = vector.load %arg4[%c0, %c0_1, %c0_2] : memref<1x8x32xf32, #tpu.memory_space<vmem>>, vector<1x8x32xf32>
    %4 = vector.shape_cast %3 : vector<1x8x32xf32> to vector<8x32xf32>
    %c0_3 = arith.constant 0 : index
    %c0_4 = arith.constant 0 : index
    %5 = vector.load %arg7[%c0_3, %c0_4] : memref<32x32xf32, #tpu.memory_space<vmem>>, vector<32x32xf32>
    %cst = arith.constant dense<0.000000e+00> : vector<8x32xf32>
    %6 = tpu.matmul %4, %5, %cst {dimension_numbers = #tpu.dot_dimension_numbers<[1], [0], [0], [1], [0, 0, 1, 1], [], []>} : vector<8x32xf32>, vector<32x32xf32>, vector<8x32xf32> -> vector<8x32xf32>
    %c0_5 = arith.constant 0 : index
    %c0_6 = arith.constant 0 : index
    %7 = vector.load %arg8[%c0_5, %c0_6] : memref<1x32xf32, #tpu.memory_space<vmem>>, vector<1x32xf32>
    %8 = vector.broadcast %7 : vector<1x32xf32> to vector<8x32xf32>
    %9 = arith.addf %6, %8 : vector<8x32xf32>
    %10 = vector.extract_strided_slice %9 {offsets = [0, 0], sizes = [8, 16], strides = [1, 1]} : vector<8x32xf32> to vector<8x16xf32>
    %11 = vector.extract_strided_slice %9 {offsets = [0, 16], sizes = [8, 16], strides = [1, 1]} : vector<8x32xf32> to vector<8x16xf32>
    %c0_7 = arith.constant 0 : index
    %c0_8 = arith.constant 0 : index
    %12 = vector.load %arg10[%c0_7, %c0_8] : memref<8x16xf32, #tpu.memory_space<vmem>>, vector<8x16xf32>
    %cst_9 = arith.constant dense<0.000000e+00> : vector<8x8xf32>
    %13 = tpu.matmul %12, %10, %cst_9 {dimension_numbers = #tpu.dot_dimension_numbers<[1], [1], [0], [0], [0, 0, 1, 0], [], []>} : vector<8x16xf32>, vector<8x16xf32>, vector<8x8xf32> -> vector<8x8xf32>
    %c0_10 = arith.constant 0 : index
    %c0_11 = arith.constant 0 : index
    %14 = vector.load %arg11[%c0_10, %c0_11] : memref<8x1xf32, #tpu.memory_space<vmem>>, vector<8x1xf32>
    %cst_12 = arith.constant dense<0xFF800000> : vector<8xf32>
    %15 = vector.multi_reduction <maximumf>, %13, %cst_12 [1] : vector<8x8xf32> to vector<8xf32>
    %16 = vector.shape_cast %15 : vector<8xf32> to vector<8x1xf32>
    %17 = arith.maximumf %14, %16 : vector<8x1xf32>
    %18 = arith.subf %14, %17 : vector<8x1xf32>
    %19 = math.exp %18 : vector<8x1xf32>
    %20 = vector.broadcast %17 : vector<8x1xf32> to vector<8x8xf32>
    %21 = arith.subf %13, %20 : vector<8x8xf32>
    %22 = math.exp %21 : vector<8x8xf32>
    %c0_13 = arith.constant 0 : index
    %c0_14 = arith.constant 0 : index
    %23 = vector.load %arg12[%c0_13, %c0_14] : memref<8x1xf32, #tpu.memory_space<vmem>>, vector<8x1xf32>
    %24 = arith.mulf %19, %23 : vector<8x1xf32>
    %cst_15 = arith.constant dense<0.000000e+00> : vector<8xf32>
    %25 = vector.multi_reduction <add>, %22, %cst_15 [1] : vector<8x8xf32> to vector<8xf32>
    %26 = vector.shape_cast %25 : vector<8xf32> to vector<8x1xf32>
    %27 = arith.addf %24, %26 : vector<8x1xf32>
    %c0_16 = arith.constant 0 : index
    %c0_17 = arith.constant 0 : index
    %28 = vector.load %arg12[%c0_16, %c0_17] : memref<8x1xf32, #tpu.memory_space<vmem>>, vector<8x1xf32>
    tpu.vector_store %arg12[%c0_16, %c0_17], %27 {strides = array<i32>} : memref<8x1xf32, #tpu.memory_space<vmem>>, vector<8x1xf32>,
    %c0_18 = arith.constant 0 : index
    %c0_19 = arith.constant 0 : index
    %29 = vector.load %arg13[%c0_18, %c0_19] : memref<8x16xf32, #tpu.memory_space<vmem>>, vector<8x16xf32>
    %30 = vector.broadcast %19 : vector<8x1xf32> to vector<8x16xf32>
    %31 = arith.mulf %30, %29 : vector<8x16xf32>
    %cst_20 = arith.constant dense<0.000000e+00> : vector<8x16xf32>
    %32 = tpu.matmul %22, %11, %cst_20 {dimension_numbers = #tpu.dot_dimension_numbers<[1], [0], [0], [1], [0, 0, 1, 1], [], []>} : vector<8x8xf32>, vector<8x16xf32>, vector<8x16xf32> -> vector<8x16xf32>
    %33 = arith.addf %31, %32 : vector<8x16xf32>
    %c0_21 = arith.constant 0 : index
    %c0_22 = arith.constant 0 : index
    %34 = vector.load %arg13[%c0_21, %c0_22] : memref<8x16xf32, #tpu.memory_space<vmem>>, vector<8x16xf32>
    tpu.vector_store %arg13[%c0_21, %c0_22], %33 {strides = array<i32>} : memref<8x16xf32, #tpu.memory_space<vmem>>, vector<8x16xf32>,
    %c0_23 = arith.constant 0 : index
    %c0_24 = arith.constant 0 : index
    %35 = vector.load %arg11[%c0_23, %c0_24] : memref<8x1xf32, #tpu.memory_space<vmem>>, vector<8x1xf32>
    tpu.vector_store %arg11[%c0_23, %c0_24], %17 {strides = array<i32>} : memref<8x1xf32, #tpu.memory_space<vmem>>, vector<8x1xf32>,
    %c0_i32_25 = arith.constant 0 : i32
    %36 = arith.cmpi eq, %arg2, %c0_i32_25 : i32
    %37 = arith.extui %36 : i1 to i32
    %c0_i32_26 = arith.constant 0 : i32
    %38 = arith.cmpi ne, %37, %c0_i32_26 : i32
    scf.if %38 {
      %c0_27 = arith.constant 0 : index
      %c0_28 = arith.constant 0 : index
      %39 = vector.load %arg13[%c0_27, %c0_28] : memref<8x16xf32, #tpu.memory_space<vmem>>, vector<8x16xf32>
      %c0_29 = arith.constant 0 : index
      %c0_30 = arith.constant 0 : index
      %40 = vector.load %arg12[%c0_29, %c0_30] : memref<8x1xf32, #tpu.memory_space<vmem>>, vector<8x1xf32>
      %41 = vector.broadcast %40 : vector<8x1xf32> to vector<8x16xf32>
      %42 = arith.divf %39, %41 : vector<8x16xf32>
      %c0_31 = arith.constant 0 : index
      %c0_32 = arith.constant 0 : index
      %c0_33 = arith.constant 0 : index
      %43 = vector.load %arg9[%c0_31, %c0_32, %c0_33] : memref<1x8x16xf32, #tpu.memory_space<vmem>>, vector<1x8x16xf32>
      %44 = vector.shape_cast %43 : vector<1x8x16xf32> to vector<8x16xf32>
      %45 = vector.shape_cast %42 : vector<8x16xf32> to vector<1x8x16xf32>
      tpu.vector_store %arg9[%c0_31, %c0_32, %c0_33], %45 {strides = array<i32>} : memref<1x8x16xf32, #tpu.memory_space<vmem>>, vector<1x8x16xf32>,
    } else {
    }
    return
  }
  func.func @transform_0(%arg0: i32, %arg1: i32, %arg2: i32) -> (i32, i32, i32) {
    %c0_i32 = arith.constant 0 : i32
    %c0_i32_0 = arith.constant 0 : i32
    return %arg0, %arg1, %c0_i32 : i32, i32, i32
  }
  func.func @transform_1(%arg0: i32, %arg1: i32, %arg2: i32) -> (i32, i32, i32) {
    %c0_i32 = arith.constant 0 : i32
    %c0_i32_0 = arith.constant 0 : i32
    return %arg0, %arg2, %c0_i32 : i32, i32, i32
  }
  func.func @transform_2(%arg0: i32, %arg1: i32, %arg2: i32) -> (i32, i32) {
    %c0_i32 = arith.constant 0 : i32
    %c0_i32_0 = arith.constant 0 : i32
    %c0_i32_1 = arith.constant 0 : i32
    return %c0_i32, %c0_i32_0 : i32, i32
  }
  func.func @transform_3(%arg0: i32, %arg1: i32, %arg2: i32) -> (i32, i32) {
    %c0_i32 = arith.constant 0 : i32
    %c0_i32_0 = arith.constant 0 : i32
    %c0_i32_1 = arith.constant 0 : i32
    return %c0_i32, %c0_i32_0 : i32, i32
  }
  func.func @transform_4(%arg0: i32, %arg1: i32, %arg2: i32) -> (i32, i32) {
    %c0_i32 = arith.constant 0 : i32
    %c0_i32_0 = arith.constant 0 : i32
    %c0_i32_1 = arith.constant 0 : i32
    return %c0_i32, %c0_i32_0 : i32, i32
  }
  func.func @transform_5(%arg0: i32, %arg1: i32, %arg2: i32) -> (i32, i32) {
    %c0_i32 = arith.constant 0 : i32
    %c0_i32_0 = arith.constant 0 : i32
    %c0_i32_1 = arith.constant 0 : i32
    return %c0_i32, %c0_i32_0 : i32, i32
  }
  func.func @transform_6(%arg0: i32, %arg1: i32, %arg2: i32) -> (i32, i32, i32) {
    %c0_i32 = arith.constant 0 : i32
    %c0_i32_0 = arith.constant 0 : i32
    return %arg0, %arg1, %c0_i32 : i32, i32, i32
  }
}

</mosaic_0001>

<llo_original>
// kernel: tpu_custom_call.1
$region0: #{tpu_custom_call.1}
  #allocation0 [shape = 'u32[]', space=smem, size = 0x4, offset = 0x4, fixed_abs, tag = 'smem constant byte address 0x4 - core index']
  #allocation1 [shape = 'u32[144,128]{1,0:T(1,128)}', space=vmem, size = 0x12000, scoped, tag = 'internal scratch']
  #allocation2 [shape = 'f32[8,16]{1,0:T(8,128)}', space=vmem, size = 0x1000, scoped, tag = 'scratch operand']
  #allocation3 [shape = 'f32[8,1]{1,0:T(8,128)}', space=vmem, size = 0x1000, scoped, tag = 'scratch operand']
  #allocation4 [shape = 'f32[8,1]{1,0:T(8,128)}', space=vmem, size = 0x1000, scoped, tag = 'scratch operand']
  #allocation5 [shape = 'f32[8,16]{1,0:T(8,128)}', space=vmem, size = 0x1000, scoped, tag = 'scratch operand']
  %s0 = inlined_call_operand.vmem [shape: f32[2,8,32], index: 0, kind: input, shape index: {}]
  %s1 = inlined_call_operand.hbm [shape: f32[2,8,32], index: 1, kind: input, shape index: {}]
  %s2 = inlined_call_operand.vmem [shape: f32[32,16], index: 2, kind: input, shape index: {}]
  %s3 = inlined_call_operand.vmem [shape: f32[1,16], index: 3, kind: input, shape index: {}]
  %s4 = inlined_call_operand.vmem [shape: f32[32,32], index: 4, kind: input, shape index: {}]
  %s5 = inlined_call_operand.vmem [shape: f32[1,32], index: 5, kind: input, shape index: {}]
  %s6 = inlined_call_operand.hbm [shape: f32[2,8,16], index: 6, kind: output, shape index: {}]
  %s7 = sld [smem:[#allocation0]]
  $region69: #{tpu_custom_call.1} parent=0
    _
  %s9 = ssub.s32 1, %s7
  %s10 = scalar_select 0, %s9, %s7
  $region1: #{tpu_custom_call.1} parent=0
    #allocation6 [shape = 'u8[8192]{0}', space=vmem, size = 0x2000, scoped, tag = 'input window, operand 1']
    #allocation7 [shape = 's32[2]{0}', space=sflag, size = 0x8, scoped, tag = 'scoped memory for tpu_custom_call.1']
    #allocation8 [shape = 's32[2]{0}', space=sflag, size = 0x8, scoped, tag = 'scoped memory for tpu_custom_call.1']
    #allocation9 [shape = 'u8[8192]{0}', space=vmem, size = 0x2000, scoped, tag = 'output window, operand 0']
    %11 = vsyncpa [#allocation7], 0
    %s12 = scalar_lea.sflag [#allocation7], 1
    %13 = vsyncpa %s12, 0
    %14 = vsyncpa [#allocation8], 0
    %s15 = scalar_lea.sflag [#allocation8], 1
    %16 = vsyncpa %s15, 0
    loop: start=0, step=1, limit=4
    $region2: #{tpu_custom_call.1} parent=1 // loop_pre_header
      _
    $region3: #{tpu_custom_call.1} parent=1 // loop_header
      %s18 = sphi 0, %s22
      %p19 = scmp.ge.s32.totalorder %s18, 4
      %s25 = sphi 0, %s44
      %s26 = sphi 0, %s40
      %s27 = sphi 0, %s36
      %s28 = sphi 0, %s25
      %s29 = sphi 0, %s26
      %s30 = sphi 0, %s27
      %s31 = sphi 0, %s28
      %s32 = sphi 0, %s29
      %s33 = sphi 0, %s30
      %s49 = sphi 0, %s51
      %s52 = sphi 0, %s49
      %s53 = sphi 0, %s52
      %s69 = sphi 0, %s53
      %s77 = sphi 0, %s79
      %s80 = sphi 0, %s77
      %s81 = sphi 0, %s80
      %s97 = sphi 0, %s81
      %s101 = sphi 0, %s101
      %s103 = sphi 0, %s101
      %s104 = sphi 0, %s103
      %s118 = sphi 0, %s104
      %s122 = sphi 0, %s122
      %s124 = sphi 0, %s122
      %s125 = sphi 0, %s124
      %s139 = sphi 0, %s125
      %s143 = sphi 0, %s143
      %s145 = sphi 0, %s143
      %s146 = sphi 0, %s145
      %s160 = sphi 0, %s146
      %s164 = sphi 0, %s164
      %s166 = sphi 0, %s164
      %s167 = sphi 0, %s166
      %s181 = sphi 0, %s167
      %s189 = sphi 0, %s191
      %s192 = sphi 0, %s189
      %s193 = sphi 0, %s192
      %s209 = sphi 0, %s193
    $region4: #{tpu_custom_call.1} parent=1 // loop_header_branch
      %21 = sbr.rel (%p19) target = $region8
    $region5: #{tpu_custom_call.1} parent=1 // loop_body
      %s23 = ssub.s32 %s18, 1
      %s24 = ssub.s32 %s18, 2
      %s34 = sadd.s32 1, %s27
      %p35 = scmp.ge.s32.totalorder %s34, 1
      %s36 = scalar_select %p35, 0, %s34
      %s37 = sadd.s32 1, %s26
      %s38 = scalar_select %p35, %s37, %s26
      %p39 = scmp.ge.s32.totalorder %s38, 1
      %s40 = scalar_select %p39, 0, %s38
      %s41 = sadd.s32 1, %s25
      %s42 = scalar_select %p39, %s41, %s25
      %p43 = scmp.ge.s32.totalorder %s42, 2
      %s44 = scalar_select %p43, 0, %s42
      %s45 = ssub.s32 %s25, %s44
      %s46 = ssub.s32 %s26, %s40
      %s47 = sor.u32 %s45, %s46
      %p48 = scmp.eq.s32.totalorder %s47, 0
      %s50 = sadd.s32 %s49, 1
      %s51 = scalar_select %p48, %s49, %s50
      %p54 = pneg %p48
      %p55 = scmp.eq.s32.totalorder %s18, 1
      %p56 = por %p54, %p55
      %p57 = scmp.ne.s32.totalorder %s49, %s52
      %p58 = scmp.eq.s32.totalorder %s18, 0
      %p59 = por %p57, %p58
      %p60 = scmp.ne.s32.totalorder %s49, %s52
      %p61 = scmp.eq.s32.totalorder %s23, 1
      %p62 = por %p60, %p61
      %p63 = scmp.ne.s32.totalorder %s52, %s53
      %p64 = scmp.eq.s32.totalorder %s23, 0
      %p65 = por %p63, %p64
      %p66 = scmp.ne.s32.totalorder %s52, %s53
      %p67 = scmp.eq.s32.totalorder %s24, 1
      %p68 = por %p66, %p67
      %p70 = scmp.ne.s32.totalorder %s53, %s69
      %p71 = scmp.eq.s32.totalorder %s24, 0
      %p72 = por %p70, %p71
      %s73 = ssub.s32 %s25, %s44
      %s74 = ssub.s32 %s27, %s36
      %s75 = sor.u32 %s73, %s74
      %p76 = scmp.eq.s32.totalorder %s75, 0
      %s78 = sadd.s32 %s77, 1
      %s79 = scalar_select %p76, %s77, %s78
      %p82 = pneg %p76
      %p83 = scmp.eq.s32.totalorder %s18, 1
      %p84 = por %p82, %p83
      %p85 = scmp.ne.s32.totalorder %s77, %s80
      %p86 = scmp.eq.s32.totalorder %s18, 0
      %p87 = por %p85, %p86
      %p88 = scmp.ne.s32.totalorder %s77, %s80
      %p89 = scmp.eq.s32.totalorder %s23, 1
      %p90 = por %p88, %p89
      %p91 = scmp.ne.s32.totalorder %s80, %s81
      %p92 = scmp.eq.s32.totalorder %s23, 0
      %p93 = por %p91, %p92
      %p94 = scmp.ne.s32.totalorder %s80, %s81
      %p95 = scmp.eq.s32.totalorder %s24, 1
      %p96 = por %p94, %p95
      %p98 = scmp.ne.s32.totalorder %s81, %s97
      %p99 = scmp.eq.s32.totalorder %s24, 0
      %p100 = por %p98, %p99
      %s102 = sadd.s32 %s101, 1
      %p105 = scmp.eq.s32.totalorder %s18, 1
      %p106 = scmp.ne.s32.totalorder %s101, %s103
      %p107 = scmp.eq.s32.totalorder %s18, 0
      %p108 = por %p106, %p107
      %p109 = scmp.ne.s32.totalorder %s101, %s103
      %p110 = scmp.eq.s32.totalorder %s23, 1
      %p111 = por %p109, %p110
      %p112 = scmp.ne.s32.totalorder %s103, %s104
      %p113 = scmp.eq.s32.totalorder %s23, 0
      %p114 = por %p112, %p113
      %p115 = scmp.ne.s32.totalorder %s103, %s104
      %p116 = scmp.eq.s32.totalorder %s24, 1
      %p117 = por %p115, %p116
      %p119 = scmp.ne.s32.totalorder %s104, %s118
      %p120 = scmp.eq.s32.totalorder %s24, 0
      %p121 = por %p119, %p120
      %s123 = sadd.s32 %s122, 1
      %p126 = scmp.eq.s32.totalorder %s18, 1
      %p127 = scmp.ne.s32.totalorder %s122, %s124
      %p128 = scmp.eq.s32.totalorder %s18, 0
      %p129 = por %p127, %p128
      %p130 = scmp.ne.s32.totalorder %s122, %s124
      %p131 = scmp.eq.s32.totalorder %s23, 1
      %p132 = por %p130, %p131
      %p133 = scmp.ne.s32.totalorder %s124, %s125
      %p134 = scmp.eq.s32.totalorder %s23, 0
      %p135 = por %p133, %p134
      %p136 = scmp.ne.s32.totalorder %s124, %s125
      %p137 = scmp.eq.s32.totalorder %s24, 1
      %p138 = por %p136, %p137
      %p140 = scmp.ne.s32.totalorder %s125, %s139
      %p141 = scmp.eq.s32.totalorder %s24, 0
      %p142 = por %p140, %p141
      %s144 = sadd.s32 %s143, 1
      %p147 = scmp.eq.s32.totalorder %s18, 1
      %p148 = scmp.ne.s32.totalorder %s143, %s145
      %p149 = scmp.eq.s32.totalorder %s18, 0
      %p150 = por %p148, %p149
      %p151 = scmp.ne.s32.totalorder %s143, %s145
      %p152 = scmp.eq.s32.totalorder %s23, 1
      %p153 = por %p151, %p152
      %p154 = scmp.ne.s32.totalorder %s145, %s146
      %p155 = scmp.eq.s32.totalorder %s23, 0
      %p156 = por %p154, %p155
      %p157 = scmp.ne.s32.totalorder %s145, %s146
      %p158 = scmp.eq.s32.totalorder %s24, 1
      %p159 = por %p157, %p158
      %p161 = scmp.ne.s32.totalorder %s146, %s160
      %p162 = scmp.eq.s32.totalorder %s24, 0
      %p163 = por %p161, %p162
      %s165 = sadd.s32 %s164, 1
      %p168 = scmp.eq.s32.totalorder %s18, 1
      %p169 = scmp.ne.s32.totalorder %s164, %s166
      %p170 = scmp.eq.s32.totalorder %s18, 0
      %p171 = por %p169, %p170
      %p172 = scmp.ne.s32.totalorder %s164, %s166
      %p173 = scmp.eq.s32.totalorder %s23, 1
      %p174 = por %p172, %p173
      %p175 = scmp.ne.s32.totalorder %s166, %s167
      %p176 = scmp.eq.s32.totalorder %s23, 0
      %p177 = por %p175, %p176
      %p178 = scmp.ne.s32.totalorder %s166, %s167
      %p179 = scmp.eq.s32.totalorder %s24, 1
      %p180 = por %p178, %p179
      %p182 = scmp.ne.s32.totalorder %s167, %s181
      %p183 = scmp.eq.s32.totalorder %s24, 0
      %p184 = por %p182, %p183
      %s185 = ssub.s32 %s25, %s44
      %s186 = ssub.s32 %s26, %s40
      %s187 = sor.u32 %s185, %s186
      %p188 = scmp.eq.s32.totalorder %s187, 0
      %s190 = sadd.s32 %s189, 1
      %s191 = scalar_select %p188, %s189, %s190
      %p194 = pneg %p188
      %p195 = scmp.eq.s32.totalorder %s18, 1
      %p196 = por %p194, %p195
      %p197 = scmp.ne.s32.totalorder %s189, %s192
      %p198 = scmp.eq.s32.totalorder %s18, 0
      %p199 = por %p197, %p198
      %p200 = scmp.ne.s32.totalorder %s189, %s192
      %p201 = scmp.eq.s32.totalorder %s23, 1
      %p202 = por %p200, %p201
      %p203 = scmp.ne.s32.totalorder %s192, %s193
      %p204 = scmp.eq.s32.totalorder %s23, 0
      %p205 = por %p203, %p204
      %p206 = scmp.ne.s32.totalorder %s192, %s193
      %p207 = scmp.eq.s32.totalorder %s24, 1
      %p208 = por %p206, %p207
      %p210 = scmp.ne.s32.totalorder %s193, %s209
      %p211 = scmp.eq.s32.totalorder %s24, 0
      %p212 = por %p210, %p211
      %p213 = scmp.le.s32.totalorder 1, %s18
      %p214 = scmp.lt.s32.totalorder %s18, 3
      %p215 = pnand %p213, %p214
      %p216 = pneg %p215
      // Predicated region
      $region9: #{tpu_custom_call.1} parent=5 // pred_check
        _
      $region10: #{tpu_custom_call.1} parent=5 // pred_check_branch
        %218 = sbr.rel (%p215) target = $region12
      $region11: #{tpu_custom_call.1} parent=5 // pred_region
        %s219 = ssub.s32 %s18, 1
        // Predicated region
        $region13: #{tpu_custom_call.1} parent=11 // pred_check
          %p220 = pneg %p114
        $region14: #{tpu_custom_call.1} parent=11 // pred_check_branch
          %222 = sbr.rel (%p220) target = $region16
        $region15: #{tpu_custom_call.1} parent=11 // pred_region
          _
        $region16: #{tpu_custom_call.1} parent=11 // pred_fallthru
          _
        // Predicated region
        $region17: #{tpu_custom_call.1} parent=11 // pred_check
          %p223 = pneg %p135
        $region18: #{tpu_custom_call.1} parent=11 // pred_check_branch
          %225 = sbr.rel (%p223) target = $region20
        $region19: #{tpu_custom_call.1} parent=11 // pred_region
          _
        $region20: #{tpu_custom_call.1} parent=11 // pred_fallthru
          _
        // Predicated region
        $region21: #{tpu_custom_call.1} parent=11 // pred_check
          %p226 = pneg %p156
        $region22: #{tpu_custom_call.1} parent=11 // pred_check_branch
          %228 = sbr.rel (%p226) target = $region24
        $region23: #{tpu_custom_call.1} parent=11 // pred_region
          _
        $region24: #{tpu_custom_call.1} parent=11 // pred_fallthru
          _
        // Predicated region
        $region25: #{tpu_custom_call.1} parent=11 // pred_check
          %p229 = pneg %p177
        $region26: #{tpu_custom_call.1} parent=11 // pred_check_branch
          %231 = sbr.rel (%p229) target = $region28
        $region27: #{tpu_custom_call.1} parent=11 // pred_region
          _
        $region28: #{tpu_custom_call.1} parent=11 // pred_fallthru
          _
      $region12: #{tpu_custom_call.1} parent=5 // pred_fallthru
        _
      %p232 = scmp.lt.s32.totalorder %s18, 2
      // Predicated region
      $region29: #{tpu_custom_call.1} parent=5 // pred_check
        %p233 = pneg %p232
      $region30: #{tpu_custom_call.1} parent=5 // pred_check_branch
        %235 = sbr.rel (%p233) target = $region32
      $region31: #{tpu_custom_call.1} parent=5 // pred_region
        // Predicated region
        $region33: #{tpu_custom_call.1} parent=31 // pred_check
          %p236 = pneg %p59
        $region34: #{tpu_custom_call.1} parent=31 // pred_check_branch
          %238 = sbr.rel (%p236) target = $region36
        $region35: #{tpu_custom_call.1} parent=31 // pred_region
          %p239 = scmp.lt.s32.totalorder %s25, 1
          %s240 = scalar_select %p239, %s25, 1
          %p241 = scmp.lt.s32.totalorder %s26, 0
          %s242 = scalar_select %p241, %s26, 0
          %s243 = sadd.s32 %s242, %s240
          %s244 = smul.addr %s243, 8
          %s245 = scalar_lea.vmem %s0, %s244
        $region36: #{tpu_custom_call.1} parent=31 // pred_fallthru
          _
        // Predicated region
        $region37: #{tpu_custom_call.1} parent=31 // pred_check
          %p246 = pneg %p87
        $region38: #{tpu_custom_call.1} parent=31 // pred_check_branch
          %248 = sbr.rel (%p246) target = $region40
        $region39: #{tpu_custom_call.1} parent=31 // pred_region
          %s249 = sand.u32 %s77, 1
          %s250 = scalar_lea.sflag [#allocation7], %s249
          %s251 = sand.u32 %s77, 1
          %s252 = smul.addr %s251, 8
          %s253 = scalar_lea.vmem [#allocation6], %s252
          %s255 = ssub.s32 128, 128
          %256 = vsyncadd %s250, %s255
          %s257 = sadd.s32 %s27, %s25
          %s258 = smul.addr %s257, 128
          %s259 = scalar_lea.hbm %s1, %s258
          %s261 = sshll.u32 %s253, 4
          %s262 = int_to_ptr.vmem [resolvable:$true] %s261
          %264 = dma.hbm_to_vmem [thread:$0]  %s259, 128, %s262, %s250
        $region40: #{tpu_custom_call.1} parent=31 // pred_fallthru
          _
      $region32: #{tpu_custom_call.1} parent=5 // pred_fallthru
        _
      %p265 = scmp.le.s32.totalorder 1, %s18
      %p266 = scmp.lt.s32.totalorder %s18, 3
      %p267 = pnand %p265, %p266
      %p268 = pneg %p267
      // Predicated region
      $region41: #{tpu_custom_call.1} parent=5 // pred_check
        _
      $region42: #{tpu_custom_call.1} parent=5 // pred_check_branch
        %270 = sbr.rel (%p267) target = $region44
      $region43: #{tpu_custom_call.1} parent=5 // pred_region
        %s271 = ssub.s32 %s18, 1
        %s272 = sand.u32 %s80, 1
        %s273 = scalar_lea.sflag [#allocation7], %s272
        %s274 = sand.u32 %s80, 1
        %s275 = smul.addr %s274, 8
        %s276 = scalar_lea.vmem [#allocation6], %s275
        // Predicated region
        $region45: #{tpu_custom_call.1} parent=43 // pred_check
          %p277 = pneg %p93
        $region46: #{tpu_custom_call.1} parent=43 // pred_check_branch
          %279 = sbr.rel (%p277) target = $region48
        $region47: #{tpu_custom_call.1} parent=43 // pred_region
          %280 = dma.done %s273, 128
        $region48: #{tpu_custom_call.1} parent=43 // pred_fallthru
          _
        %p281 = scmp.lt.s32.totalorder %s28, 1
        %s282 = scalar_select %p281, %s28, 1
        %p283 = scmp.lt.s32.totalorder %s29, 0
        %s284 = scalar_select %p283, %s29, 0
        %s285 = sadd.s32 %s284, %s282
        %s286 = smul.addr %s285, 8
        %s287 = scalar_lea.vmem %s0, %s286
        %p288 = pneg %p65
        %p289 = pneg %p62
        %s290 = sand.u32 %s80, 1
        %s291 = scalar_lea.sflag [#allocation7], %s290
        %s292 = sand.u32 %s80, 1
        %s293 = smul.addr %s292, 8
        %s294 = scalar_lea.vmem [#allocation6], %s293
        %p295 = pneg %p93
        %p296 = pneg %p90
        %p297 = pneg %p114
        %p298 = pneg %p111
        %p299 = pneg %p135
        %p300 = pneg %p132
        %p301 = pneg %p156
        %p302 = pneg %p153
        %p303 = pneg %p177
        %p304 = pneg %p174
        %p305 = pneg %p205
        %p306 = pneg %p202
        %s307 = sand.u32 %s192, 1
        %s308 = scalar_lea.sflag [#allocation8], %s307
        %s309 = sand.u32 %s192, 1
        %s310 = smul.addr %s309, 8
        %s311 = scalar_lea.vmem [#allocation9], %s310
        %p312 = scmp.lt.s32.totalorder %s28, 1
        %s313 = scalar_select %p312, %s28, 1
        %p314 = scmp.lt.s32.totalorder %s29, 0
        %s315 = scalar_select %p314, %s29, 0
        %s316 = sadd.s32 %s315, %s313
        %s317 = smul.addr %s316, 8
        %s318 = scalar_lea.vmem %s0, %s317
        %p319 = scmp.eq.s32.totalorder %s30, 0
        // Predicated region
        $region49: #{tpu_custom_call.1} parent=43 // pred_check
          %p320 = pneg %p319
        $region50: #{tpu_custom_call.1} parent=43 // pred_check_branch
          %322 = sbr.rel (%p320) target = $region52
        $region51: #{tpu_custom_call.1} parent=43 // pred_region
          %v323 = vld [vmem:[%s318] sm:$0xff]
          %v324 = vld [vmem:[%s2] sm:$0xff]
          %v325 = vld [vmem:[%s2 + $0x8] sm:$0xff]
          %v326 = vld [vmem:[%s2 + $0x10] sm:$0xff]
          %v327 = vld [vmem:[%s2 + $0x18] sm:$0xff]
          %v328 = vld [vmem:[%s3] sm:$0x1]
          %v330 = vlaneseq
          %v331 = vshrl.u32 %v330, 7
          %v332 = vsub.s32 0, %v331
          %v333 = vrot.slane %v328, %v332
          %vm335 = vcmask 261120
          %v337 = vsel %vm335, %v323, 0
          %339 = vmatprep.subr.mxu0 0.0
          %340 = vmatpush1.msra.mxu0 %v324
          %341 = vmatprep.subr.mxu0 0.0
          %342 = vmatpush1.msra.mxu0 %v325
          %343 = vmatprep.subr.mxu0 0.0
          %344 = vmatpush1.msra.mxu0 %v326
          %345 = vmatprep.subr.mxu0 0.0
          %346 = vmatpush1.msra.mxu0 %v327
          %347 = vmatprep.subr.mxu0 0.0
          %348 = vmatpush1.msra.mxu0 0.0
          %349 = vmatprep.subr.mxu0 0.0
          %350 = vmatpush1.msra.mxu0 0.0
          %351 = vmatprep.subr.mxu0 0.0
          %352 = vmatpush1.msra.mxu0 0.0
          %353 = vmatprep.subr.mxu0 0.0
          %354 = vmatpush1.msra.mxu0 0.0
          %355 = vmatprep.subr.mxu0 0.0
          %356 = vmatpush1.msra.mxu0 0.0
          %357 = vmatprep.subr.mxu0 0.0
          %358 = vmatpush1.msra.mxu0 0.0
          %359 = vmatprep.subr.mxu0 0.0
          %360 = vmatpush1.msra.mxu0 0.0
          %361 = vmatprep.subr.mxu0 0.0
          %362 = vmatpush1.msra.mxu0 0.0
          %363 = vmatprep.subr.mxu0 0.0
          %364 = vmatpush1.msra.mxu0 0.0
          %365 = vmatprep.subr.mxu0 0.0
          %366 = vmatpush1.msra.mxu0 0.0
          %367 = vmatprep.subr.mxu0 0.0
          %368 = vmatpush1.msra.mxu0 0.0
          %369 = vmatprep.subr.mxu0 0.0
          %370 = vmatpush1.msra.mxu0 0.0
          %371 = vmatprep.subr.mxu0 0.0
          %372 = vmatpush1.msra.mxu0 0.0
          %373 = vmatprep.subr.mxu0 0.0
          %374 = vmatpush1.msra.mxu0 0.0
          %375 = vmatprep.subr.mxu0 0.0
          %376 = vmatpush1.msra.mxu0 0.0
          %377 = vmatprep.subr.mxu0 0.0
          %378 = vmatpush1.msra.mxu0 0.0
          %379 = vmatprep.subr.mxu0 0.0
          %380 = vmatpush1.msra.mxu0 0.0
          %381 = vmatprep.subr.mxu0 0.0
          %382 = vmatpush1.msra.mxu0 0.0
          %383 = vmatprep.subr.mxu0 0.0
          %384 = vmatpush1.msra.mxu0 0.0
          %385 = vmatprep.subr.mxu0 0.0
          %386 = vmatpush1.msra.mxu0 0.0
          %387 = vmatprep.subr.mxu0 0.0
          %388 = vmatpush1.msra.mxu0 0.0
          %389 = vmatprep.subr.mxu0 0.0
          %390 = vmatpush1.msra.mxu0 0.0
          %391 = vmatprep.subr.mxu0 0.0
          %392 = vmatpush1.msra.mxu0 0.0
          %393 = vmatprep.subr.mxu0 0.0
          %394 = vmatpush1.msra.mxu0 0.0
          %395 = vmatprep.subr.mxu0 0.0
          %396 = vmatpush1.msra.mxu0 0.0
          %397 = vmatprep.subr.mxu0 0.0
          %398 = vmatpush1.msra.mxu0 0.0
          %399 = vmatprep.subr.mxu0 0.0
          %400 = vmatpush1.msra.mxu0 0.0
          %401 = vmatprep.subr.mxu0 0.0
          %402 = vmatpush1.msra.mxu0 0.0
          %403 = vmatprep.mubr.f32.mxu0 0.0
          %404 = vmatmul.mubr.f32.gmra.mrb[0].mxu0 %v337
          %v405 = vpop.f32.mrb[0].mxu0
          %v406 = vadd.f32 %v333, %v405
          %v407 = vpop.f32.mrb[0].mxu0
          %408 = vdwg.mxu0
          %v409 = vmul.f32 %v406, 0.25
          %vm410 = vcmask 130048
          %411 = vst.msk [vmem:[#allocation2] sm:$0xff] %vm410, %v409
          %vm412 = vcmask 7168
          %413 = vst.msk [vmem:[#allocation3] sm:$0xff] %vm412, -inf
          %414 = vst.msk [vmem:[#allocation4] sm:$0xff] %vm412, 0.0
          %415 = vst.msk [vmem:[#allocation5] sm:$0xff] %vm410, 0.0
        $region52: #{tpu_custom_call.1} parent=43 // pred_fallthru
          _
        %v416 = vld [vmem:[%s276] sm:$0xff]
        %v417 = vld [vmem:[%s4] sm:$0xff]
        %v418 = vld [vmem:[%s4 + $0x8] sm:$0xff]
        %v419 = vld [vmem:[%s4 + $0x10] sm:$0xff]
        %v420 = vld [vmem:[%s4 + $0x18] sm:$0xff]
        %v421 = vld [vmem:[%s5] sm:$0x1]
        %v423 = vlaneseq
        %v424 = vshrl.u32 %v423, 7
        %v425 = vsub.s32 0, %v424
        %v426 = vrot.slane %v421, %v425
        %vm428 = vcmask 261120
        %v430 = vsel %vm428, %v416, 0
        %432 = vmatprep.subr.mxu0 0.0
        %433 = vmatpush1.msra.mxu0 %v417
        %434 = vmatprep.subr.mxu0 0.0
        %435 = vmatpush1.msra.mxu0 %v418
        %436 = vmatprep.subr.mxu0 0.0
        %437 = vmatpush1.msra.mxu0 %v419
        %438 = vmatprep.subr.mxu0 0.0
        %439 = vmatpush1.msra.mxu0 %v420
        %440 = vmatprep.subr.mxu0 0.0
        %441 = vmatpush1.msra.mxu0 0.0
        %442 = vmatprep.subr.mxu0 0.0
        %443 = vmatpush1.msra.mxu0 0.0
        %444 = vmatprep.subr.mxu0 0.0
        %445 = vmatpush1.msra.mxu0 0.0
        %446 = vmatprep.subr.mxu0 0.0
        %447 = vmatpush1.msra.mxu0 0.0
        %448 = vmatprep.subr.mxu0 0.0
        %449 = vmatpush1.msra.mxu0 0.0
        %450 = vmatprep.subr.mxu0 0.0
        %451 = vmatpush1.msra.mxu0 0.0
        %452 = vmatprep.subr.mxu0 0.0
        %453 = vmatpush1.msra.mxu0 0.0
        %454 = vmatprep.subr.mxu0 0.0
        %455 = vmatpush1.msra.mxu0 0.0
        %456 = vmatprep.subr.mxu0 0.0
        %457 = vmatpush1.msra.mxu0 0.0
        %458 = vmatprep.subr.mxu0 0.0
        %459 = vmatpush1.msra.mxu0 0.0
        %460 = vmatprep.subr.mxu0 0.0
        %461 = vmatpush1.msra.mxu0 0.0
        %462 = vmatprep.subr.mxu0 0.0
        %463 = vmatpush1.msra.mxu0 0.0
        %464 = vmatprep.subr.mxu0 0.0
        %465 = vmatpush1.msra.mxu0 0.0
        %466 = vmatprep.subr.mxu0 0.0
        %467 = vmatpush1.msra.mxu0 0.0
        %468 = vmatprep.subr.mxu0 0.0
        %469 = vmatpush1.msra.mxu0 0.0
        %470 = vmatprep.subr.mxu0 0.0
        %471 = vmatpush1.msra.mxu0 0.0
        %472 = vmatprep.subr.mxu0 0.0
        %473 = vmatpush1.msra.mxu0 0.0
        %474 = vmatprep.subr.mxu0 0.0
        %475 = vmatpush1.msra.mxu0 0.0
        %476 = vmatprep.subr.mxu0 0.0
        %477 = vmatpush1.msra.mxu0 0.0
        %478 = vmatprep.subr.mxu0 0.0
        %479 = vmatpush1.msra.mxu0 0.0
        %480 = vmatprep.subr.mxu0 0.0
        %481 = vmatpush1.msra.mxu0 0.0
        %482 = vmatprep.subr.mxu0 0.0
        %483 = vmatpush1.msra.mxu0 0.0
        %484 = vmatprep.subr.mxu0 0.0
        %485 = vmatpush1.msra.mxu0 0.0
        %486 = vmatprep.subr.mxu0 0.0
        %487 = vmatpush1.msra.mxu0 0.0
        %488 = vmatprep.subr.mxu0 0.0
        %489 = vmatpush1.msra.mxu0 0.0
        %490 = vmatprep.subr.mxu0 0.0
        %491 = vmatpush1.msra.mxu0 0.0
        %492 = vmatprep.subr.mxu0 0.0
        %493 = vmatpush1.msra.mxu0 0.0
        %494 = vmatprep.subr.mxu0 0.0
        %495 = vmatpush1.msra.mxu0 0.0
        %496 = vmatprep.mubr.f32.mxu0 0.0
        %497 = vmatmul.mubr.f32.gmra.mrb[0].mxu0 %v430
        %v498 = vpop.f32.mrb[0].mxu0
        %v499 = vadd.f32 %v426, %v498
        %v500 = vpop.f32.mrb[0].mxu0
        %501 = vdwg.mxu0
        %v502 = vld [vmem:[#allocation2] sm:$0xff]
        %vm503 = vcmask 130048
        %v505 = vsel %vm503, %v502, 0
        %v508 = vsel %vm503, %v499, 0
        %510 = vmatprep.subr.mxu0 0.0
        %511 = vmatpush1.xpose.msra.mxu0 %v508
        %512 = vmatprep.subr.mxu0 0.0
        %513 = vmatpush1.xpose.msra.mxu0 0.0
        %514 = vmatprep.subr.mxu0 0.0
        %515 = vmatpush1.xpose.msra.mxu0 0.0
        %516 = vmatprep.subr.mxu0 0.0
        %517 = vmatpush1.xpose.msra.mxu0 0.0
        %518 = vmatprep.subr.mxu0 0.0
        %519 = vmatpush1.xpose.msra.mxu0 0.0
        %520 = vmatprep.subr.mxu0 0.0
        %521 = vmatpush1.xpose.msra.mxu0 0.0
        %522 = vmatprep.subr.mxu0 0.0
        %523 = vmatpush1.xpose.msra.mxu0 0.0
        %524 = vmatprep.subr.mxu0 0.0
        %525 = vmatpush1.xpose.msra.mxu0 0.0
        %526 = vmatprep.subr.mxu0 0.0
        %527 = vmatpush1.xpose.msra.mxu0 0.0
        %528 = vmatprep.subr.mxu0 0.0
        %529 = vmatpush1.xpose.msra.mxu0 0.0
        %530 = vmatprep.subr.mxu0 0.0
        %531 = vmatpush1.xpose.msra.mxu0 0.0
        %532 = vmatprep.subr.mxu0 0.0
        %533 = vmatpush1.xpose.msra.mxu0 0.0
        %534 = vmatprep.subr.mxu0 0.0
        %535 = vmatpush1.xpose.msra.mxu0 0.0
        %536 = vmatprep.subr.mxu0 0.0
        %537 = vmatpush1.xpose.msra.mxu0 0.0
        %538 = vmatprep.subr.mxu0 0.0
        %539 = vmatpush1.xpose.msra.mxu0 0.0
        %540 = vmatprep.subr.mxu0 0.0
        %541 = vmatpush1.xpose.msra.mxu0 0.0
        %542 = vmatprep.subr.mxu0 0.0
        %543 = vmatpush1.xpose.msra.mxu0 0.0
        %544 = vmatprep.subr.mxu0 0.0
        %545 = vmatpush1.xpose.msra.mxu0 0.0
        %546 = vmatprep.subr.mxu0 0.0
        %547 = vmatpush1.xpose.msra.mxu0 0.0
        %548 = vmatprep.subr.mxu0 0.0
        %549 = vmatpush1.xpose.msra.mxu0 0.0
        %550 = vmatprep.subr.mxu0 0.0
        %551 = vmatpush1.xpose.msra.mxu0 0.0
        %552 = vmatprep.subr.mxu0 0.0
        %553 = vmatpush1.xpose.msra.mxu0 0.0
        %554 = vmatprep.subr.mxu0 0.0
        %555 = vmatpush1.xpose.msra.mxu0 0.0
        %556 = vmatprep.subr.mxu0 0.0
        %557 = vmatpush1.xpose.msra.mxu0 0.0
        %558 = vmatprep.subr.mxu0 0.0
        %559 = vmatpush1.xpose.msra.mxu0 0.0
        %560 = vmatprep.subr.mxu0 0.0
        %561 = vmatpush1.xpose.msra.mxu0 0.0
        %562 = vmatprep.subr.mxu0 0.0
        %563 = vmatpush1.xpose.msra.mxu0 0.0
        %564 = vmatprep.subr.mxu0 0.0
        %565 = vmatpush1.xpose.msra.mxu0 0.0
        %566 = vmatprep.subr.mxu0 0.0
        %567 = vmatpush1.xpose.msra.mxu0 0.0
        %568 = vmatprep.subr.mxu0 0.0
        %569 = vmatpush1.xpose.msra.mxu0 0.0
        %570 = vmatprep.subr.mxu0 0.0
        %571 = vmatpush1.xpose.msra.mxu0 0.0
        %572 = vmatprep.subr.mxu0 0.0
        %573 = vmatpush1.xpose.msra.mxu0 0.0
        %574 = vmatprep.mubr.f32.mxu0 0.0
        %575 = vmatmul.mubr.f32.gmra.mrb[0].mxu0 %v505
        %v576 = vpop.f32.mrb[0].mxu0
        %v577 = vadd.f32 0.0, %v576
        %v578 = vpop.f32.mrb[0].mxu0
        %579 = vdwg.mxu0
        %v580 = vld [vmem:[#allocation3] sm:$0xff]
        %vm581 = vcmask 64512
        %v582 = vsel %vm581, %v577, -inf
        %583 = vmax.xlane.f32.xlu0 %v582
        %v584 = vpop.xlane.xlu0 %583
        %v585 = vmax.f32 %v580, %v584
        %v586 = vsub.f32 %v580, %v585
        %v587 = vmul.f32 %v586, 1.442695
        %v588 = vpow.pop %v587
        %590 = vset.pattern.permute.xlu0 0
        %591 = vperm.xlu0 %590, %v585
        %v592 = vpop.permute.xlu0 %591
        %v594 = vsub.f32 %v577, %v592
        %v595 = vmul.f32 %v594, 1.442695
        %v596 = vpow.pop %v595
        %v597 = vld [vmem:[#allocation4] sm:$0xff]
        %v598 = vmul.f32 %v588, %v597
        %v599 = vsel %vm581, %v596, 0.0
        %600 = vadd.xlane.f32.xlu0 %v599
        %v601 = vpop.xlane.xlu0 %600
        %v602 = vadd.f32 %v598, %v601
        %vm603 = vcmask 7168
        %604 = vst.msk [vmem:[#allocation4] sm:$0xff] %vm603, %v602
        %v605 = vld [vmem:[#allocation5] sm:$0xff]
        %607 = vset.pattern.permute.xlu0 0
        %608 = vperm.xlu0 %607, %v588
        %v609 = vpop.permute.xlu0 %608
        %v611 = vmul.f32 %v609, %v605
        %612 = vrot.lane.b32.xlu0 %v499, 112
        %v613 = vpop.permute.xlu0 %612
        %v616 = vsel %vm581, %v596, 0
        %618 = vmatprep.subr.mxu0 0.0
        %619 = vmatpush1.msra.mxu0 %v613
        %620 = vmatprep.subr.mxu0 0.0
        %621 = vmatpush1.msra.mxu0 0.0
        %622 = vmatprep.subr.mxu0 0.0
        %623 = vmatpush1.msra.mxu0 0.0
        %624 = vmatprep.subr.mxu0 0.0
        %625 = vmatpush1.msra.mxu0 0.0
        %626 = vmatprep.subr.mxu0 0.0
        %627 = vmatpush1.msra.mxu0 0.0
        %628 = vmatprep.subr.mxu0 0.0
        %629 = vmatpush1.msra.mxu0 0.0
        %630 = vmatprep.subr.mxu0 0.0
        %631 = vmatpush1.msra.mxu0 0.0
        %632 = vmatprep.subr.mxu0 0.0
        %633 = vmatpush1.msra.mxu0 0.0
        %634 = vmatprep.subr.mxu0 0.0
        %635 = vmatpush1.msra.mxu0 0.0
        %636 = vmatprep.subr.mxu0 0.0
        %637 = vmatpush1.msra.mxu0 0.0
        %638 = vmatprep.subr.mxu0 0.0
        %639 = vmatpush1.msra.mxu0 0.0
        %640 = vmatprep.subr.mxu0 0.0
        %641 = vmatpush1.msra.mxu0 0.0
        %642 = vmatprep.subr.mxu0 0.0
        %643 = vmatpush1.msra.mxu0 0.0
        %644 = vmatprep.subr.mxu0 0.0
        %645 = vmatpush1.msra.mxu0 0.0
        %646 = vmatprep.subr.mxu0 0.0
        %647 = vmatpush1.msra.mxu0 0.0
        %648 = vmatprep.subr.mxu0 0.0
        %649 = vmatpush1.msra.mxu0 0.0
        %650 = vmatprep.subr.mxu0 0.0
        %651 = vmatpush1.msra.mxu0 0.0
        %652 = vmatprep.subr.mxu0 0.0
        %653 = vmatpush1.msra.mxu0 0.0
        %654 = vmatprep.subr.mxu0 0.0
        %655 = vmatpush1.msra.mxu0 0.0
        %656 = vmatprep.subr.mxu0 0.0
        %657 = vmatpush1.msra.mxu0 0.0
        %658 = vmatprep.subr.mxu0 0.0
        %659 = vmatpush1.msra.mxu0 0.0
        %660 = vmatprep.subr.mxu0 0.0
        %661 = vmatpush1.msra.mxu0 0.0
        %662 = vmatprep.subr.mxu0 0.0
        %663 = vmatpush1.msra.mxu0 0.0
        %664 = vmatprep.subr.mxu0 0.0
        %665 = vmatpush1.msra.mxu0 0.0
        %666 = vmatprep.subr.mxu0 0.0
        %667 = vmatpush1.msra.mxu0 0.0
        %668 = vmatprep.subr.mxu0 0.0
        %669 = vmatpush1.msra.mxu0 0.0
        %670 = vmatprep.subr.mxu0 0.0
        %671 = vmatpush1.msra.mxu0 0.0
        %672 = vmatprep.subr.mxu0 0.0
        %673 = vmatpush1.msra.mxu0 0.0
        %674 = vmatprep.subr.mxu0 0.0
        %675 = vmatpush1.msra.mxu0 0.0
        %676 = vmatprep.subr.mxu0 0.0
        %677 = vmatpush1.msra.mxu0 0.0
        %678 = vmatprep.subr.mxu0 0.0
        %679 = vmatpush1.msra.mxu0 0.0
        %680 = vmatprep.subr.mxu0 0.0
        %681 = vmatpush1.msra.mxu0 0.0
        %682 = vmatprep.mubr.f32.mxu0 0.0
        %683 = vmatmul.mubr.f32.gmra.mrb[0].mxu0 %v616
        %v684 = vpop.f32.mrb[0].mxu0
        %v685 = vadd.f32 0.0, %v684
        %v686 = vpop.f32.mrb[0].mxu0
        %687 = vdwg.mxu0
        %v688 = vadd.f32 %v611, %v685
        %689 = vst.msk [vmem:[#allocation5] sm:$0xff] %vm503, %v688
        %690 = vst.msk [vmem:[#allocation3] sm:$0xff] %vm603, %v585
        // Predicated region
        $region53: #{tpu_custom_call.1} parent=43 // pred_check
          %p691 = pneg %p319
        $region54: #{tpu_custom_call.1} parent=43 // pred_check_branch
          %693 = sbr.rel (%p691) target = $region56
        $region55: #{tpu_custom_call.1} parent=43 // pred_region
          %v694 = vld [vmem:[#allocation5] sm:$0xff]
          %v695 = vld [vmem:[#allocation4] sm:$0xff]
          %697 = vset.pattern.permute.xlu0 0
          %698 = vperm.xlu0 %697, %v695
          %v699 = vpop.permute.xlu0 %698
          %v701 = vrcp.pop %v699
          %v702 = vmul.f32 %v694, %v701
          %703 = vst.msk [vmem:[%s311] sm:$0xff] %vm503, %v702
        $region56: #{tpu_custom_call.1} parent=43 // pred_fallthru
          _
        %s704 = sand.u32 %s192, 1
        %s705 = scalar_lea.sflag [#allocation8], %s704
        %s706 = sand.u32 %s192, 1
        %s707 = smul.addr %s706, 8
        %s708 = scalar_lea.vmem [#allocation9], %s707
        // Predicated region
        $region57: #{tpu_custom_call.1} parent=43 // pred_check
          %p709 = pneg %p202
        $region58: #{tpu_custom_call.1} parent=43 // pred_check_branch
          %711 = sbr.rel (%p709) target = $region60
        $region59: #{tpu_custom_call.1} parent=43 // pred_region
          %s713 = ssub.s32 128, 128
          %714 = vsyncadd %s705, %s713
          %s715 = sadd.s32 %s29, %s28
          %s716 = smul.addr %s715, 128
          %s717 = scalar_lea.hbm %s6, %s716
          %s719 = sshll.u32 %s708, 4
          %s720 = int_to_ptr.vmem [resolvable:$true] %s719
          %722 = dma.vmem_to_hbm [thread:$0]  %s720, 128, %s717, %s705
        $region60: #{tpu_custom_call.1} parent=43 // pred_fallthru
          _
      $region44: #{tpu_custom_call.1} parent=5 // pred_fallthru
        _
      %p723 = scmp.le.s32.totalorder 2, %s18
      // Predicated region
      $region61: #{tpu_custom_call.1} parent=5 // pred_check
        %p724 = pneg %p723
      $region62: #{tpu_custom_call.1} parent=5 // pred_check_branch
        %726 = sbr.rel (%p724) target = $region64
      $region63: #{tpu_custom_call.1} parent=5 // pred_region
        %s727 = ssub.s32 %s18, 2
        // Predicated region
        $region65: #{tpu_custom_call.1} parent=63 // pred_check
          %p728 = pneg %p208
        $region66: #{tpu_custom_call.1} parent=63 // pred_check_branch
          %730 = sbr.rel (%p728) target = $region68
        $region67: #{tpu_custom_call.1} parent=63 // pred_region
          %s731 = sand.u32 %s193, 1
          %s732 = scalar_lea.sflag [#allocation8], %s731
          %s733 = sand.u32 %s193, 1
          %s734 = smul.addr %s733, 8
          %s735 = scalar_lea.vmem [#allocation9], %s734
          %736 = dma.done %s732, 128
        $region68: #{tpu_custom_call.1} parent=63 // pred_fallthru
          _
      $region64: #{tpu_custom_call.1} parent=5 // pred_fallthru
        _
    $region6: #{tpu_custom_call.1} parent=1 // loop_footer
      %s22 = sadd.s32 1, %s18
    $region7: #{tpu_custom_call.1} parent=1 // loop_footer_branch
      %17 = sbr.rel target = $region3
    $region8: #{tpu_custom_call.1} parent=1 // loop_exit
      _
    %737 = vsyncpa [#allocation7], 1
    %s738 = scalar_lea.sflag [#allocation7], 1
    %739 = vsyncpa %s738, 1
    %740 = vsyncpa [#allocation8], 1
    %s741 = scalar_lea.sflag [#allocation8], 1
    %742 = vsyncpa %s741, 1

</llo_original>
